<compile_context>
chip_gen: v7x
topology: tpu7x:2x2x1
jax: 0.10.0
libtpu: 0.0.40
codegen_flags: <defaults>
</compile_context>

<pallas_src>
import jax
import jax.numpy as jnp
from jax.experimental import pallas as pl
from jax.experimental.pallas import tpu as pltpu


def _make_seg_head_kernel(num_features):
    """Kernel: F feature tiles (Cf,t) + F W1 blocks (C,Cf) + W2 (K,C) + b (K,1)."""

    def kernel(*refs):
        feat_refs = refs[:num_features]                    # F x (Cf, t)
        w1_refs = refs[num_features:2 * num_features]      # F x (C, Cf)
        w2_ref, b2_ref, o_ref = refs[2 * num_features:]    # (K, C), (K, 1), (K, t)

        # Fused 1x1 conv over the (virtual) channel concat, transposed
        # orientation: y^T = sum_i W1_i @ x_i^T, accumulated in f32 on the MXU.
        yt = jnp.dot(w1_refs[0][...], feat_refs[0][...],
                     preferred_element_type=jnp.float32)
        for i in range(1, num_features):
            yt = yt + jnp.dot(w1_refs[i][...], feat_refs[i][...],
                              preferred_element_type=jnp.float32)
        yt = jnp.maximum(yt, 0.0)                          # ReLU

        # BatchNorm (eval) is pre-folded into w2/b2.  Predict conv + bias.
        o_ref[...] = (jnp.dot(w2_ref[...], yt, preferred_element_type=jnp.float32)
                      + b2_ref[...]).astype(o_ref.dtype)

    return kernel


def _spatial_tiling(hw, batch, target):
    """Pick (tile_hw, grid_hw, padded_hw) for the pixels-on-lanes axis."""
    if hw <= target:
        if batch >= 2 or hw < 256:
            return hw, 1, hw                       # one tile; last dim == full dim
        # batch == 1: split spatial so the parallel grid has >= 2 steps (v7x 2 TCs).
        half = -(-hw // 2)
        t = -(-half // 128) * 128                  # lane-aligned half tile
        g = -(-hw // t)
        return t, g, g * t
    t = target                                     # target is a multiple of 128
    g = -(-hw // t)
    return t, g, g * t


def _vmem_cap_bytes():
    """Physical VMEM of the current chip; conservative fallback is v7x's 64 MiB."""
    try:
        info = pltpu.get_tpu_info()
        for name in ("vmem_capacity_bytes", "vmem_size_bytes", "vmem_bytes"):
            v = getattr(info, name, None)
            if v:
                return int(v)
    except Exception:
        pass
    return 64 * 1024 * 1024


def segformer_head_pallas(features, params, *, target_tile_hw=2048, stream_dtype=None):
    """features: list of F NCHW arrays (B, Cf, H, W). Returns NCHW (B, K, H, W) f32."""
    w1 = params["w1"]                                   # (C, F*Cf)
    gamma, beta = params["gamma"], params["beta"]
    run_mean, run_var, eps = params["run_mean"], params["run_var"], params["eps"]
    w2, b2 = params["w2"], params["b2"]                 # (K, C), (K,)

    F = len(features)
    B, Cf, H, W = features[0].shape
    C = w1.shape[0]
    assert w1.shape[1] == F * Cf, "fuse conv in-channels must match concat width"
    K = w2.shape[0]
    HW = H * W

    # ---- parameter folding (tiny, done once in the wrapper) -----------------
    scale = (gamma / jnp.sqrt(run_var + eps)).astype(jnp.float32)        # (C,)
    shift = (beta - run_mean * scale).astype(jnp.float32)                # (C,)
    w2_fold = w2.astype(jnp.float32) * scale[None, :]                    # (K, C)
    b2_fold = (w2.astype(jnp.float32) @ shift
               + b2.astype(jnp.float32)).reshape(K, 1)                   # (K, 1)

    w_dtype = jnp.float32 if stream_dtype is None else stream_dtype
    w1_f = w1.astype(w_dtype)
    w1_blocks = [w1_f[:, i * Cf:(i + 1) * Cf] for i in range(F)]         # F x (C, Cf)

    # ---- spatial tiling; NCHW inputs stay in place (reshape is free) --------
    t_hw, grid_hw, HWp = _spatial_tiling(HW, B, target_tile_hw)
    feats = []
    for f in features:
        xf = f.reshape(B, Cf, HW)
        if stream_dtype is not None and xf.dtype != stream_dtype:
            # Optional narrow streaming (e.g. bf16 / fp8 on v7x).  Off by
            # default: reading f32 NCHW directly is less total HBM traffic
            # than an extra cast pass + narrow read for this mem-bound op.
            xf = xf.astype(stream_dtype)
        if HWp != HW:
            xf = jnp.pad(xf, ((0, 0), (0, 0), (0, HWp - HW)))
        feats.append(xf)

    # ---- VMEM budget / compiler params --------------------------------------
    bpe_f = jnp.dtype(feats[0].dtype).itemsize
    bpe_w = jnp.dtype(w_dtype).itemsize
    est = (2 * F * Cf * t_hw * bpe_f              # feature tiles, double-buffered
           + 2 * K * t_hw * 4                     # output tile, double-buffered
           + 2 * (F * C * Cf * bpe_w + K * C * 4 + K * 4)  # weights (const index)
           + 3 * C * t_hw * 4)                    # (C, t_hw) f32 intermediate + temps
    cap = int(_vmem_cap_bytes() * 0.8)
    vmem_limit = int(min(max(est + (8 << 20), 32 << 20), cap))

    feat_specs = [pl.BlockSpec((None, Cf, t_hw), lambda b, j: (b, 0, j))
                  for _ in range(F)]
    # Constant-index weight inputs: fetched once; their (small) double-buffer
    # reservation is already counted in `est`.
    w1_specs = [pl.BlockSpec((C, Cf), lambda b, j: (0, 0)) for _ in range(F)]

    out = pl.pallas_call(
        _make_seg_head_kernel(F),
        out_shape=jax.ShapeDtypeStruct((B, K, HWp), jnp.float32),
        grid_spec=pltpu.PrefetchScalarGridSpec(
            num_scalar_prefetch=0,
            grid=(B, grid_hw),
            in_specs=feat_specs + w1_specs + [
                pl.BlockSpec((K, C), lambda b, j: (0, 0)),   # BN-folded predict W
                pl.BlockSpec((K, 1), lambda b, j: (0, 0)),   # BN-folded bias
            ],
            out_specs=pl.BlockSpec((None, K, t_hw), lambda b, j: (b, 0, j)),
        ),
        compiler_params=pltpu.CompilerParams(
            dimension_semantics=("parallel", "parallel"),
            vmem_limit_bytes=vmem_limit),
    )(*feats, *w1_blocks, w2_fold, b2_fold)

    if HWp != HW:
        out = out[:, :, :HW]
    return out.reshape(B, K, H, W)


def segformer_head_ref(features, params):
    """Pure-JAX f32 reference with the same (eval-mode BN) semantics."""
    x = jnp.concatenate(features, axis=1)
    B, CF, H, W = x.shape
    xf = jnp.transpose(x, (0, 2, 3, 1)).reshape(-1, CF)
    y = jnp.maximum(xf @ params["w1"].T, 0.0)
    scale = params["gamma"] / jnp.sqrt(params["run_var"] + params["eps"])
    shift = params["beta"] - params["run_mean"] * scale
    y = y * scale + shift
    out = y @ params["w2"].T + params["b2"]
    K = params["w2"].shape[0]
    return out.reshape(B, H, W, K).transpose(0, 3, 1, 2)


def make_params(key, channels, num_classes, num_features=4):
    k1, k2, k3, k4, k5, k6, k7 = jax.random.split(key, 7)
    C, F, K = channels, num_features, num_classes
    return {
        # fuse: Conv2d(C*F -> C, 1x1, bias=False), weight shape (C, C*F)
        "w1": 0.1 * jax.random.normal(k1, (C, C * F), jnp.float32),
        # BatchNorm2d(C) parameters + running stats (eval mode)
        "gamma": 1.0 + 0.05 * jax.random.normal(k2, (C,), jnp.float32),
        "beta": 0.05 * jax.random.normal(k3, (C,), jnp.float32),
        "run_mean": 0.1 * jax.random.normal(k4, (C,), jnp.float32),
        "run_var": 1.0 + 0.1 * jnp.abs(jax.random.normal(k5, (C,), jnp.float32)),
        "eps": jnp.float32(1e-5),
        # predict: Conv2d(C -> K, 1x1, bias=True), weight shape (K, C)
        "w2": 0.1 * jax.random.normal(k6, (K, C), jnp.float32),
        "b2": 0.05 * jax.random.normal(k7, (K,), jnp.float32),
    }


if __name__ == "__main__":
    key = jax.random.PRNGKey(0)
    num_classes = 5
    C = 4                         # per-feature channels (fuse in-channels = 16)

    kf, kp = jax.random.split(key)
    params = make_params(kp, channels=C, num_classes=num_classes, num_features=4)

    # Two configs: one with a lane-aligned spatial size, one exercising the
    # "tile == full (non-128) spatial dim" path.
    for (B, H, W) in [(2, 16, 16),   # H*W = 256
                      (2, 10, 10)]:  # H*W = 100
        feat_keys = jax.random.split(jax.random.fold_in(kf, H), 4)
        features = [jax.random.normal(k, (B, C, H, W), jnp.float32)
                    for k in feat_keys]

        out = jax.block_until_ready(segformer_head_pallas(features, params))
        assert out.shape == (B, num_classes, H, W)

        ref = segformer_head_ref(features, params)
        err = float(jnp.max(jnp.abs(out - ref)))
        assert jnp.allclose(out, ref, atol=2e-2, rtol=2e-2), err

    print("KERNEL_OK")
</pallas_src>

<mosaic_0001>
module attributes {stable_mosaic.version = 11 : i64} {
  func.func @kernel(%arg0: i32, %arg1: i32, %arg2: memref<1x4x256xf32, #tpu.memory_space<vmem>>, %arg3: memref<1x4x256xf32, #tpu.memory_space<vmem>>, %arg4: memref<1x4x256xf32, #tpu.memory_space<vmem>>, %arg5: memref<1x4x256xf32, #tpu.memory_space<vmem>>, %arg6: memref<4x4xf32, #tpu.memory_space<vmem>>, %arg7: memref<4x4xf32, #tpu.memory_space<vmem>>, %arg8: memref<4x4xf32, #tpu.memory_space<vmem>>, %arg9: memref<4x4xf32, #tpu.memory_space<vmem>>, %arg10: memref<5x4xf32, #tpu.memory_space<vmem>>, %arg11: memref<5x1xf32, #tpu.memory_space<vmem>>, %arg12: memref<1x5x256xf32, #tpu.memory_space<vmem>>) attributes {dimension_semantics = [#tpu.dimension_semantics<parallel>, #tpu.dimension_semantics<parallel>], iteration_bounds = array<i64: 2, 1>, scalar_prefetch = 0 : i64, scratch_operands = 0 : i64, tpu.core_type = #tpu.core_type<tc>, window_params = [{transform_indices = @transform_0, window_bounds = array<i64: 1, 4, 256>}, {transform_indices = @transform_1, window_bounds = array<i64: 1, 4, 256>}, {transform_indices = @transform_2, window_bounds = array<i64: 1, 4, 256>}, {transform_indices = @transform_3, window_bounds = array<i64: 1, 4, 256>}, {pipeline_mode = #tpu.pipeline_mode<synchronous>, transform_indices = @transform_4, window_bounds = array<i64: 4, 4>}, {pipeline_mode = #tpu.pipeline_mode<synchronous>, transform_indices = @transform_5, window_bounds = array<i64: 4, 4>}, {pipeline_mode = #tpu.pipeline_mode<synchronous>, transform_indices = @transform_6, window_bounds = array<i64: 4, 4>}, {pipeline_mode = #tpu.pipeline_mode<synchronous>, transform_indices = @transform_7, window_bounds = array<i64: 4, 4>}, {pipeline_mode = #tpu.pipeline_mode<synchronous>, transform_indices = @transform_8, window_bounds = array<i64: 5, 4>}, {pipeline_mode = #tpu.pipeline_mode<synchronous>, transform_indices = @transform_9, window_bounds = array<i64: 5, 1>}, {transform_indices = @transform_10, window_bounds = array<i64: 1, 5, 256>}]} {
    %c0 = arith.constant 0 : index
    %c0_0 = arith.constant 0 : index
    %0 = vector.load %arg6[%c0, %c0_0] : memref<4x4xf32, #tpu.memory_space<vmem>>, vector<4x4xf32>
    %c0_1 = arith.constant 0 : index
    %c0_2 = arith.constant 0 : index
    %c0_3 = arith.constant 0 : index
    %1 = vector.load %arg2[%c0_1, %c0_2, %c0_3] : memref<1x4x256xf32, #tpu.memory_space<vmem>>, vector<1x4x256xf32>
    %2 = vector.shape_cast %1 : vector<1x4x256xf32> to vector<4x256xf32>
    %cst = arith.constant dense<0.000000e+00> : vector<4x256xf32>
    %3 = tpu.matmul %0, %2, %cst {dimension_numbers = #tpu.dot_dimension_numbers<[1], [0], [0], [1], [0, 0, 1, 1], [], []>} : vector<4x4xf32>, vector<4x256xf32>, vector<4x256xf32> -> vector<4x256xf32>
    %c0_4 = arith.constant 0 : index
    %c0_5 = arith.constant 0 : index
    %4 = vector.load %arg7[%c0_4, %c0_5] : memref<4x4xf32, #tpu.memory_space<vmem>>, vector<4x4xf32>
    %c0_6 = arith.constant 0 : index
    %c0_7 = arith.constant 0 : index
    %c0_8 = arith.constant 0 : index
    %5 = vector.load %arg3[%c0_6, %c0_7, %c0_8] : memref<1x4x256xf32, #tpu.memory_space<vmem>>, vector<1x4x256xf32>
    %6 = vector.shape_cast %5 : vector<1x4x256xf32> to vector<4x256xf32>
    %cst_9 = arith.constant dense<0.000000e+00> : vector<4x256xf32>
    %7 = tpu.matmul %4, %6, %cst_9 {dimension_numbers = #tpu.dot_dimension_numbers<[1], [0], [0], [1], [0, 0, 1, 1], [], []>} : vector<4x4xf32>, vector<4x256xf32>, vector<4x256xf32> -> vector<4x256xf32>
    %8 = arith.addf %3, %7 : vector<4x256xf32>
    %c0_10 = arith.constant 0 : index
    %c0_11 = arith.constant 0 : index
    %9 = vector.load %arg8[%c0_10, %c0_11] : memref<4x4xf32, #tpu.memory_space<vmem>>, vector<4x4xf32>
    %c0_12 = arith.constant 0 : index
    %c0_13 = arith.constant 0 : index
    %c0_14 = arith.constant 0 : index
    %10 = vector.load %arg4[%c0_12, %c0_13, %c0_14] : memref<1x4x256xf32, #tpu.memory_space<vmem>>, vector<1x4x256xf32>
    %11 = vector.shape_cast %10 : vector<1x4x256xf32> to vector<4x256xf32>
    %cst_15 = arith.constant dense<0.000000e+00> : vector<4x256xf32>
    %12 = tpu.matmul %9, %11, %cst_15 {dimension_numbers = #tpu.dot_dimension_numbers<[1], [0], [0], [1], [0, 0, 1, 1], [], []>} : vector<4x4xf32>, vector<4x256xf32>, vector<4x256xf32> -> vector<4x256xf32>
    %13 = arith.addf %8, %12 : vector<4x256xf32>
    %c0_16 = arith.constant 0 : index
    %c0_17 = arith.constant 0 : index
    %14 = vector.load %arg9[%c0_16, %c0_17] : memref<4x4xf32, #tpu.memory_space<vmem>>, vector<4x4xf32>
    %c0_18 = arith.constant 0 : index
    %c0_19 = arith.constant 0 : index
    %c0_20 = arith.constant 0 : index
    %15 = vector.load %arg5[%c0_18, %c0_19, %c0_20] : memref<1x4x256xf32, #tpu.memory_space<vmem>>, vector<1x4x256xf32>
    %16 = vector.shape_cast %15 : vector<1x4x256xf32> to vector<4x256xf32>
    %cst_21 = arith.constant dense<0.000000e+00> : vector<4x256xf32>
    %17 = tpu.matmul %14, %16, %cst_21 {dimension_numbers = #tpu.dot_dimension_numbers<[1], [0], [0], [1], [0, 0, 1, 1], [], []>} : vector<4x4xf32>, vector<4x256xf32>, vector<4x256xf32> -> vector<4x256xf32>
    %18 = arith.addf %13, %17 : vector<4x256xf32>
    %cst_22 = arith.constant 0.000000e+00 : f32
    %19 = vector.broadcast %cst_22 : f32 to vector<4x256xf32>
    %20 = arith.maximumf %18, %19 : vector<4x256xf32>
    %c0_23 = arith.constant 0 : index
    %c0_24 = arith.constant 0 : index
    %21 = vector.load %arg10[%c0_23, %c0_24] : memref<5x4xf32, #tpu.memory_space<vmem>>, vector<5x4xf32>
    %cst_25 = arith.constant dense<0.000000e+00> : vector<5x256xf32>
    %22 = tpu.matmul %21, %20, %cst_25 {dimension_numbers = #tpu.dot_dimension_numbers<[1], [0], [0], [1], [0, 0, 1, 1], [], []>} : vector<5x4xf32>, vector<4x256xf32>, vector<5x256xf32> -> vector<5x256xf32>
    %c0_26 = arith.constant 0 : index
    %c0_27 = arith.constant 0 : index
    %23 = vector.load %arg11[%c0_26, %c0_27] : memref<5x1xf32, #tpu.memory_space<vmem>>, vector<5x1xf32>
    %24 = vector.broadcast %23 : vector<5x1xf32> to vector<5x256xf32>
    %25 = arith.addf %22, %24 : vector<5x256xf32>
    %c0_28 = arith.constant 0 : index
    %c0_29 = arith.constant 0 : index
    %c0_30 = arith.constant 0 : index
    %26 = vector.load %arg12[%c0_28, %c0_29, %c0_30] : memref<1x5x256xf32, #tpu.memory_space<vmem>>, vector<1x5x256xf32>
    %27 = vector.shape_cast %26 : vector<1x5x256xf32> to vector<5x256xf32>
    %28 = vector.shape_cast %25 : vector<5x256xf32> to vector<1x5x256xf32>
    tpu.vector_store %arg12[%c0_28, %c0_29, %c0_30], %28 {strides = array<i32>} : memref<1x5x256xf32, #tpu.memory_space<vmem>>, vector<1x5x256xf32>,
    return
  }
  func.func @transform_0(%arg0: i32, %arg1: i32) -> (i32, i32, i32) {
    %c0_i32 = arith.constant 0 : i32
    %c0_i32_0 = arith.constant 0 : i32
    return %arg0, %c0_i32, %arg1 : i32, i32, i32
  }
  func.func @transform_1(%arg0: i32, %arg1: i32) -> (i32, i32, i32) {
    %c0_i32 = arith.constant 0 : i32
    %c0_i32_0 = arith.constant 0 : i32
    return %arg0, %c0_i32, %arg1 : i32, i32, i32
  }
  func.func @transform_2(%arg0: i32, %arg1: i32) -> (i32, i32, i32) {
    %c0_i32 = arith.constant 0 : i32
    %c0_i32_0 = arith.constant 0 : i32
    return %arg0, %c0_i32, %arg1 : i32, i32, i32
  }
  func.func @transform_3(%arg0: i32, %arg1: i32) -> (i32, i32, i32) {
    %c0_i32 = arith.constant 0 : i32
    %c0_i32_0 = arith.constant 0 : i32
    return %arg0, %c0_i32, %arg1 : i32, i32, i32
  }
  func.func @transform_4(%arg0: i32, %arg1: i32) -> (i32, i32) {
    %c0_i32 = arith.constant 0 : i32
    %c0_i32_0 = arith.constant 0 : i32
    %c0_i32_1 = arith.constant 0 : i32
    return %c0_i32, %c0_i32_0 : i32, i32
  }
  func.func @transform_5(%arg0: i32, %arg1: i32) -> (i32, i32) {
    %c0_i32 = arith.constant 0 : i32
    %c0_i32_0 = arith.constant 0 : i32
    %c0_i32_1 = arith.constant 0 : i32
    return %c0_i32, %c0_i32_0 : i32, i32
  }
  func.func @transform_6(%arg0: i32, %arg1: i32) -> (i32, i32) {
    %c0_i32 = arith.constant 0 : i32
    %c0_i32_0 = arith.constant 0 : i32
    %c0_i32_1 = arith.constant 0 : i32
    return %c0_i32, %c0_i32_0 : i32, i32
  }
  func.func @transform_7(%arg0: i32, %arg1: i32) -> (i32, i32) {
    %c0_i32 = arith.constant 0 : i32
    %c0_i32_0 = arith.constant 0 : i32
    %c0_i32_1 = arith.constant 0 : i32
    return %c0_i32, %c0_i32_0 : i32, i32
  }
  func.func @transform_8(%arg0: i32, %arg1: i32) -> (i32, i32) {
    %c0_i32 = arith.constant 0 : i32
    %c0_i32_0 = arith.constant 0 : i32
    %c0_i32_1 = arith.constant 0 : i32
    return %c0_i32, %c0_i32_0 : i32, i32
  }
  func.func @transform_9(%arg0: i32, %arg1: i32) -> (i32, i32) {
    %c0_i32 = arith.constant 0 : i32
    %c0_i32_0 = arith.constant 0 : i32
    %c0_i32_1 = arith.constant 0 : i32
    return %c0_i32, %c0_i32_0 : i32, i32
  }
  func.func @transform_10(%arg0: i32, %arg1: i32) -> (i32, i32, i32) {
    %c0_i32 = arith.constant 0 : i32
    %c0_i32_0 = arith.constant 0 : i32
    return %arg0, %c0_i32, %arg1 : i32, i32, i32
  }
}

</mosaic_0001>

<llo_original>
// kernel: tpu_custom_call.1
$region0: #{tpu_custom_call.1}
  #allocation0 [shape = 'u32[]', space=smem, size = 0x4, offset = 0x4, fixed_abs, tag = 'smem constant byte address 0x4 - core index']
  #allocation1 [shape = 'u32[144,128]{1,0:T(1,128)}', space=vmem, size = 0x12000, scoped, tag = 'internal scratch']
  %s0 = inlined_call_operand.vmem [shape: f32[2,4,256], index: 0, kind: input, shape index: {}]
  %s1 = inlined_call_operand.hbm [shape: f32[2,4,256], index: 1, kind: input, shape index: {}]
  %s2 = inlined_call_operand.hbm [shape: f32[2,4,256], index: 2, kind: input, shape index: {}]
  %s3 = inlined_call_operand.vmem [shape: f32[2,4,256], index: 3, kind: input, shape index: {}]
  %s4 = inlined_call_operand.hbm [shape: f32[4,4], index: 4, kind: input, shape index: {}]
  %s5 = inlined_call_operand.hbm [shape: f32[4,4], index: 5, kind: input, shape index: {}]
  %s6 = inlined_call_operand.vmem [shape: f32[4,4], index: 6, kind: input, shape index: {}]
  %s7 = inlined_call_operand.vmem [shape: f32[4,4], index: 7, kind: input, shape index: {}]
  %s8 = inlined_call_operand.vmem [shape: f32[5,4], index: 8, kind: input, shape index: {}]
  %s9 = inlined_call_operand.vmem [shape: f32[5,1], index: 9, kind: input, shape index: {}]
  %s10 = inlined_call_operand.vmem [shape: f32[2,5,256], index: 10, kind: output, shape index: {}]
  %s11 = sld [smem:[#allocation0]]
  $region89: #{tpu_custom_call.1} parent=0
    _
  %s13 = ssub.s32 1, %s11
  %s14 = scalar_select 0, %s13, %s11
  $region1: #{tpu_custom_call.1} parent=0
    #allocation2 [shape = 'u8[8192]{0}', space=vmem, size = 0x2000, scoped, tag = 'input window, operand 1']
    #allocation3 [shape = 's32[2]{0}', space=sflag, size = 0x8, scoped, tag = 'scoped memory for tpu_custom_call.1']
    #allocation4 [shape = 'u8[8192]{0}', space=vmem, size = 0x2000, scoped, tag = 'input window, operand 2']
    #allocation5 [shape = 's32[2]{0}', space=sflag, size = 0x8, scoped, tag = 'scoped memory for tpu_custom_call.1']
    #allocation6 [shape = 'u8[2048]{0}', space=vmem, size = 0x800, scoped, tag = 'input window, operand 4, single buffered']
    #allocation7 [shape = 'u8[2048]{0}', space=vmem, size = 0x800, scoped, tag = 'input window, operand 5, single buffered']
    #allocation8 [shape = 's32[1]{0}', space=sflag, size = 0x4, scoped, tag = 'scoped memory for tpu_custom_call.1']
    %15 = vsyncpa [#allocation3], 0
    %s16 = scalar_lea.sflag [#allocation3], 1
    %17 = vsyncpa %s16, 0
    %18 = vsyncpa [#allocation5], 0
    %s19 = scalar_lea.sflag [#allocation5], 1
    %20 = vsyncpa %s19, 0
    %21 = vsyncpa [#allocation8], 0
    loop: start=0, step=1, limit=4
    $region2: #{tpu_custom_call.1} parent=1 // loop_pre_header
      _
    $region3: #{tpu_custom_call.1} parent=1 // loop_header
      %s23 = sphi 0, %s27
      %p24 = scmp.ge.s32.totalorder %s23, 4
      %s30 = sphi 0, %s42
      %s31 = sphi 0, %s38
      %s32 = sphi 0, %s30
      %s33 = sphi 0, %s31
      %s34 = sphi 0, %s32
      %s35 = sphi 0, %s33
      %s47 = sphi 0, %s49
      %s50 = sphi 0, %s47
      %s51 = sphi 0, %s50
      %s67 = sphi 0, %s51
      %s75 = sphi 0, %s77
      %s78 = sphi 0, %s75
      %s79 = sphi 0, %s78
      %s95 = sphi 0, %s79
      %s103 = sphi 0, %s105
      %s106 = sphi 0, %s103
      %s107 = sphi 0, %s106
      %s123 = sphi 0, %s107
      %s131 = sphi 0, %s133
      %s134 = sphi 0, %s131
      %s135 = sphi 0, %s134
      %s151 = sphi 0, %s135
      %s155 = sphi 0, %s155
      %s157 = sphi 0, %s155
      %s158 = sphi 0, %s157
      %s172 = sphi 0, %s158
      %s176 = sphi 0, %s176
      %s178 = sphi 0, %s176
      %s179 = sphi 0, %s178
      %s193 = sphi 0, %s179
      %s197 = sphi 0, %s197
      %s199 = sphi 0, %s197
      %s200 = sphi 0, %s199
      %s214 = sphi 0, %s200
      %s218 = sphi 0, %s218
      %s220 = sphi 0, %s218
      %s221 = sphi 0, %s220
      %s235 = sphi 0, %s221
      %s239 = sphi 0, %s239
      %s241 = sphi 0, %s239
      %s242 = sphi 0, %s241
      %s256 = sphi 0, %s242
      %s260 = sphi 0, %s260
      %s262 = sphi 0, %s260
      %s263 = sphi 0, %s262
      %s277 = sphi 0, %s263
      %s285 = sphi 0, %s287
      %s288 = sphi 0, %s285
      %s289 = sphi 0, %s288
      %s305 = sphi 0, %s289
    $region4: #{tpu_custom_call.1} parent=1 // loop_header_branch
      %26 = sbr.rel (%p24) target = $region8
    $region5: #{tpu_custom_call.1} parent=1 // loop_body
      %s28 = ssub.s32 %s23, 1
      %s29 = ssub.s32 %s23, 2
      %s36 = sadd.s32 1, %s31
      %p37 = scmp.ge.s32.totalorder %s36, 1
      %s38 = scalar_select %p37, 0, %s36
      %s39 = sadd.s32 1, %s30
      %s40 = scalar_select %p37, %s39, %s30
      %p41 = scmp.ge.s32.totalorder %s40, 2
      %s42 = scalar_select %p41, 0, %s40
      %s43 = ssub.s32 %s30, %s42
      %s44 = ssub.s32 %s31, %s38
      %s45 = sor.u32 %s43, %s44
      %p46 = scmp.eq.s32.totalorder %s45, 0
      %s48 = sadd.s32 %s47, 1
      %s49 = scalar_select %p46, %s47, %s48
      %p52 = pneg %p46
      %p53 = scmp.eq.s32.totalorder %s23, 1
      %p54 = por %p52, %p53
      %p55 = scmp.ne.s32.totalorder %s47, %s50
      %p56 = scmp.eq.s32.totalorder %s23, 0
      %p57 = por %p55, %p56
      %p58 = scmp.ne.s32.totalorder %s47, %s50
      %p59 = scmp.eq.s32.totalorder %s28, 1
      %p60 = por %p58, %p59
      %p61 = scmp.ne.s32.totalorder %s50, %s51
      %p62 = scmp.eq.s32.totalorder %s28, 0
      %p63 = por %p61, %p62
      %p64 = scmp.ne.s32.totalorder %s50, %s51
      %p65 = scmp.eq.s32.totalorder %s29, 1
      %p66 = por %p64, %p65
      %p68 = scmp.ne.s32.totalorder %s51, %s67
      %p69 = scmp.eq.s32.totalorder %s29, 0
      %p70 = por %p68, %p69
      %s71 = ssub.s32 %s30, %s42
      %s72 = ssub.s32 %s31, %s38
      %s73 = sor.u32 %s71, %s72
      %p74 = scmp.eq.s32.totalorder %s73, 0
      %s76 = sadd.s32 %s75, 1
      %s77 = scalar_select %p74, %s75, %s76
      %p80 = pneg %p74
      %p81 = scmp.eq.s32.totalorder %s23, 1
      %p82 = por %p80, %p81
      %p83 = scmp.ne.s32.totalorder %s75, %s78
      %p84 = scmp.eq.s32.totalorder %s23, 0
      %p85 = por %p83, %p84
      %p86 = scmp.ne.s32.totalorder %s75, %s78
      %p87 = scmp.eq.s32.totalorder %s28, 1
      %p88 = por %p86, %p87
      %p89 = scmp.ne.s32.totalorder %s78, %s79
      %p90 = scmp.eq.s32.totalorder %s28, 0
      %p91 = por %p89, %p90
      %p92 = scmp.ne.s32.totalorder %s78, %s79
      %p93 = scmp.eq.s32.totalorder %s29, 1
      %p94 = por %p92, %p93
      %p96 = scmp.ne.s32.totalorder %s79, %s95
      %p97 = scmp.eq.s32.totalorder %s29, 0
      %p98 = por %p96, %p97
      %s99 = ssub.s32 %s30, %s42
      %s100 = ssub.s32 %s31, %s38
      %s101 = sor.u32 %s99, %s100
      %p102 = scmp.eq.s32.totalorder %s101, 0
      %s104 = sadd.s32 %s103, 1
      %s105 = scalar_select %p102, %s103, %s104
      %p108 = pneg %p102
      %p109 = scmp.eq.s32.totalorder %s23, 1
      %p110 = por %p108, %p109
      %p111 = scmp.ne.s32.totalorder %s103, %s106
      %p112 = scmp.eq.s32.totalorder %s23, 0
      %p113 = por %p111, %p112
      %p114 = scmp.ne.s32.totalorder %s103, %s106
      %p115 = scmp.eq.s32.totalorder %s28, 1
      %p116 = por %p114, %p115
      %p117 = scmp.ne.s32.totalorder %s106, %s107
      %p118 = scmp.eq.s32.totalorder %s28, 0
      %p119 = por %p117, %p118
      %p120 = scmp.ne.s32.totalorder %s106, %s107
      %p121 = scmp.eq.s32.totalorder %s29, 1
      %p122 = por %p120, %p121
      %p124 = scmp.ne.s32.totalorder %s107, %s123
      %p125 = scmp.eq.s32.totalorder %s29, 0
      %p126 = por %p124, %p125
      %s127 = ssub.s32 %s30, %s42
      %s128 = ssub.s32 %s31, %s38
      %s129 = sor.u32 %s127, %s128
      %p130 = scmp.eq.s32.totalorder %s129, 0
      %s132 = sadd.s32 %s131, 1
      %s133 = scalar_select %p130, %s131, %s132
      %p136 = pneg %p130
      %p137 = scmp.eq.s32.totalorder %s23, 1
      %p138 = por %p136, %p137
      %p139 = scmp.ne.s32.totalorder %s131, %s134
      %p140 = scmp.eq.s32.totalorder %s23, 0
      %p141 = por %p139, %p140
      %p142 = scmp.ne.s32.totalorder %s131, %s134
      %p143 = scmp.eq.s32.totalorder %s28, 1
      %p144 = por %p142, %p143
      %p145 = scmp.ne.s32.totalorder %s134, %s135
      %p146 = scmp.eq.s32.totalorder %s28, 0
      %p147 = por %p145, %p146
      %p148 = scmp.ne.s32.totalorder %s134, %s135
      %p149 = scmp.eq.s32.totalorder %s29, 1
      %p150 = por %p148, %p149
      %p152 = scmp.ne.s32.totalorder %s135, %s151
      %p153 = scmp.eq.s32.totalorder %s29, 0
      %p154 = por %p152, %p153
      %s156 = sadd.s32 %s155, 1
      %p159 = scmp.eq.s32.totalorder %s23, 1
      %p160 = scmp.ne.s32.totalorder %s155, %s157
      %p161 = scmp.eq.s32.totalorder %s23, 0
      %p162 = por %p160, %p161
      %p163 = scmp.ne.s32.totalorder %s155, %s157
      %p164 = scmp.eq.s32.totalorder %s28, 1
      %p165 = por %p163, %p164
      %p166 = scmp.ne.s32.totalorder %s157, %s158
      %p167 = scmp.eq.s32.totalorder %s28, 0
      %p168 = por %p166, %p167
      %p169 = scmp.ne.s32.totalorder %s157, %s158
      %p170 = scmp.eq.s32.totalorder %s29, 1
      %p171 = por %p169, %p170
      %p173 = scmp.ne.s32.totalorder %s158, %s172
      %p174 = scmp.eq.s32.totalorder %s29, 0
      %p175 = por %p173, %p174
      %s177 = sadd.s32 %s176, 1
      %p180 = scmp.eq.s32.totalorder %s23, 1
      %p181 = scmp.ne.s32.totalorder %s176, %s178
      %p182 = scmp.eq.s32.totalorder %s23, 0
      %p183 = por %p181, %p182
      %p184 = scmp.ne.s32.totalorder %s176, %s178
      %p185 = scmp.eq.s32.totalorder %s28, 1
      %p186 = por %p184, %p185
      %p187 = scmp.ne.s32.totalorder %s178, %s179
      %p188 = scmp.eq.s32.totalorder %s28, 0
      %p189 = por %p187, %p188
      %p190 = scmp.ne.s32.totalorder %s178, %s179
      %p191 = scmp.eq.s32.totalorder %s29, 1
      %p192 = por %p190, %p191
      %p194 = scmp.ne.s32.totalorder %s179, %s193
      %p195 = scmp.eq.s32.totalorder %s29, 0
      %p196 = por %p194, %p195
      %s198 = sadd.s32 %s197, 1
      %p201 = scmp.eq.s32.totalorder %s23, 1
      %p202 = scmp.ne.s32.totalorder %s197, %s199
      %p203 = scmp.eq.s32.totalorder %s23, 0
      %p204 = por %p202, %p203
      %p205 = scmp.ne.s32.totalorder %s197, %s199
      %p206 = scmp.eq.s32.totalorder %s28, 1
      %p207 = por %p205, %p206
      %p208 = scmp.ne.s32.totalorder %s199, %s200
      %p209 = scmp.eq.s32.totalorder %s28, 0
      %p210 = por %p208, %p209
      %p211 = scmp.ne.s32.totalorder %s199, %s200
      %p212 = scmp.eq.s32.totalorder %s29, 1
      %p213 = por %p211, %p212
      %p215 = scmp.ne.s32.totalorder %s200, %s214
      %p216 = scmp.eq.s32.totalorder %s29, 0
      %p217 = por %p215, %p216
      %s219 = sadd.s32 %s218, 1
      %p222 = scmp.eq.s32.totalorder %s23, 1
      %p223 = scmp.ne.s32.totalorder %s218, %s220
      %p224 = scmp.eq.s32.totalorder %s23, 0
      %p225 = por %p223, %p224
      %p226 = scmp.ne.s32.totalorder %s218, %s220
      %p227 = scmp.eq.s32.totalorder %s28, 1
      %p228 = por %p226, %p227
      %p229 = scmp.ne.s32.totalorder %s220, %s221
      %p230 = scmp.eq.s32.totalorder %s28, 0
      %p231 = por %p229, %p230
      %p232 = scmp.ne.s32.totalorder %s220, %s221
      %p233 = scmp.eq.s32.totalorder %s29, 1
      %p234 = por %p232, %p233
      %p236 = scmp.ne.s32.totalorder %s221, %s235
      %p237 = scmp.eq.s32.totalorder %s29, 0
      %p238 = por %p236, %p237
      %s240 = sadd.s32 %s239, 1
      %p243 = scmp.eq.s32.totalorder %s23, 1
      %p244 = scmp.ne.s32.totalorder %s239, %s241
      %p245 = scmp.eq.s32.totalorder %s23, 0
      %p246 = por %p244, %p245
      %p247 = scmp.ne.s32.totalorder %s239, %s241
      %p248 = scmp.eq.s32.totalorder %s28, 1
      %p249 = por %p247, %p248
      %p250 = scmp.ne.s32.totalorder %s241, %s242
      %p251 = scmp.eq.s32.totalorder %s28, 0
      %p252 = por %p250, %p251
      %p253 = scmp.ne.s32.totalorder %s241, %s242
      %p254 = scmp.eq.s32.totalorder %s29, 1
      %p255 = por %p253, %p254
      %p257 = scmp.ne.s32.totalorder %s242, %s256
      %p258 = scmp.eq.s32.totalorder %s29, 0
      %p259 = por %p257, %p258
      %s261 = sadd.s32 %s260, 1
      %p264 = scmp.eq.s32.totalorder %s23, 1
      %p265 = scmp.ne.s32.totalorder %s260, %s262
      %p266 = scmp.eq.s32.totalorder %s23, 0
      %p267 = por %p265, %p266
      %p268 = scmp.ne.s32.totalorder %s260, %s262
      %p269 = scmp.eq.s32.totalorder %s28, 1
      %p270 = por %p268, %p269
      %p271 = scmp.ne.s32.totalorder %s262, %s263
      %p272 = scmp.eq.s32.totalorder %s28, 0
      %p273 = por %p271, %p272
      %p274 = scmp.ne.s32.totalorder %s262, %s263
      %p275 = scmp.eq.s32.totalorder %s29, 1
      %p276 = por %p274, %p275
      %p278 = scmp.ne.s32.totalorder %s263, %s277
      %p279 = scmp.eq.s32.totalorder %s29, 0
      %p280 = por %p278, %p279
      %s281 = ssub.s32 %s30, %s42
      %s282 = ssub.s32 %s31, %s38
      %s283 = sor.u32 %s281, %s282
      %p284 = scmp.eq.s32.totalorder %s283, 0
      %s286 = sadd.s32 %s285, 1
      %s287 = scalar_select %p284, %s285, %s286
      %p290 = pneg %p284
      %p291 = scmp.eq.s32.totalorder %s23, 1
      %p292 = por %p290, %p291
      %p293 = scmp.ne.s32.totalorder %s285, %s288
      %p294 = scmp.eq.s32.totalorder %s23, 0
      %p295 = por %p293, %p294
      %p296 = scmp.ne.s32.totalorder %s285, %s288
      %p297 = scmp.eq.s32.totalorder %s28, 1
      %p298 = por %p296, %p297
      %p299 = scmp.ne.s32.totalorder %s288, %s289
      %p300 = scmp.eq.s32.totalorder %s28, 0
      %p301 = por %p299, %p300
      %p302 = scmp.ne.s32.totalorder %s288, %s289
      %p303 = scmp.eq.s32.totalorder %s29, 1
      %p304 = por %p302, %p303
      %p306 = scmp.ne.s32.totalorder %s289, %s305
      %p307 = scmp.eq.s32.totalorder %s29, 0
      %p308 = por %p306, %p307
      %p309 = scmp.le.s32.totalorder 1, %s23
      %p310 = scmp.lt.s32.totalorder %s23, 3
      %p311 = pnand %p309, %p310
      %p312 = pneg %p311
      // Predicated region
      $region9: #{tpu_custom_call.1} parent=5 // pred_check
        _
      $region10: #{tpu_custom_call.1} parent=5 // pred_check_branch
        %314 = sbr.rel (%p311) target = $region12
      $region11: #{tpu_custom_call.1} parent=5 // pred_region
        %s315 = ssub.s32 %s23, 1
        // Predicated region
        $region13: #{tpu_custom_call.1} parent=11 // pred_check
          %p316 = pneg %p168
        $region14: #{tpu_custom_call.1} parent=11 // pred_check_branch
          %318 = sbr.rel (%p316) target = $region16
        $region15: #{tpu_custom_call.1} parent=11 // pred_region
          %s320 = ssub.s32 64, 64
          %321 = vsyncadd [#allocation5], %s320
          %s323 = sshll.u32 [#allocation6], 4
          %s324 = int_to_ptr.vmem [resolvable:$true] %s323
          %326 = dma.hbm_to_vmem [thread:$0]  %s4, 64, %s324, [#allocation5]
        $region16: #{tpu_custom_call.1} parent=11 // pred_fallthru
          _
        // Predicated region
        $region17: #{tpu_custom_call.1} parent=11 // pred_check
          %p327 = pneg %p189
        $region18: #{tpu_custom_call.1} parent=11 // pred_check_branch
          %329 = sbr.rel (%p327) target = $region20
        $region19: #{tpu_custom_call.1} parent=11 // pred_region
          %s331 = ssub.s32 64, 64
          %332 = vsyncadd [#allocation8], %s331
          %s334 = sshll.u32 [#allocation7], 4
          %s335 = int_to_ptr.vmem [resolvable:$true] %s334
          %337 = dma.hbm_to_vmem [thread:$0]  %s5, 64, %s335, [#allocation8]
        $region20: #{tpu_custom_call.1} parent=11 // pred_fallthru
          _
        // Predicated region
        $region21: #{tpu_custom_call.1} parent=11 // pred_check
          %p338 = pneg %p210
        $region22: #{tpu_custom_call.1} parent=11 // pred_check_branch
          %340 = sbr.rel (%p338) target = $region24
        $region23: #{tpu_custom_call.1} parent=11 // pred_region
          _
        $region24: #{tpu_custom_call.1} parent=11 // pred_fallthru
          _
        // Predicated region
        $region25: #{tpu_custom_call.1} parent=11 // pred_check
          %p341 = pneg %p231
        $region26: #{tpu_custom_call.1} parent=11 // pred_check_branch
          %343 = sbr.rel (%p341) target = $region28
        $region27: #{tpu_custom_call.1} parent=11 // pred_region
          _
        $region28: #{tpu_custom_call.1} parent=11 // pred_fallthru
          _
        // Predicated region
        $region29: #{tpu_custom_call.1} parent=11 // pred_check
          %p344 = pneg %p252
        $region30: #{tpu_custom_call.1} parent=11 // pred_check_branch
          %346 = sbr.rel (%p344) target = $region32
        $region31: #{tpu_custom_call.1} parent=11 // pred_region
          _
        $region32: #{tpu_custom_call.1} parent=11 // pred_fallthru
          _
        // Predicated region
        $region33: #{tpu_custom_call.1} parent=11 // pred_check
          %p347 = pneg %p273
        $region34: #{tpu_custom_call.1} parent=11 // pred_check_branch
          %349 = sbr.rel (%p347) target = $region36
        $region35: #{tpu_custom_call.1} parent=11 // pred_region
          _
        $region36: #{tpu_custom_call.1} parent=11 // pred_fallthru
          _
      $region12: #{tpu_custom_call.1} parent=5 // pred_fallthru
        _
      %p350 = scmp.lt.s32.totalorder %s23, 2
      // Predicated region
      $region37: #{tpu_custom_call.1} parent=5 // pred_check
        %p351 = pneg %p350
      $region38: #{tpu_custom_call.1} parent=5 // pred_check_branch
        %353 = sbr.rel (%p351) target = $region40
      $region39: #{tpu_custom_call.1} parent=5 // pred_region
        // Predicated region
        $region41: #{tpu_custom_call.1} parent=39 // pred_check
          %p354 = pneg %p57
        $region42: #{tpu_custom_call.1} parent=39 // pred_check_branch
          %356 = sbr.rel (%p354) target = $region44
        $region43: #{tpu_custom_call.1} parent=39 // pred_region
          %s357 = smul.u32 2, %s31
          %p358 = scmp.lt.s32.totalorder %s30, 1
          %s359 = scalar_select %p358, %s30, 1
          %p360 = scmp.lt.s32.totalorder %s357, 1
          %s361 = scalar_select %p360, %s357, 1
          %s362 = smul.addr %s359, 2
          %s363 = sadd.s32 %s361, %s362
          %s364 = smul.addr %s363, 4
          %s365 = scalar_lea.vmem %s0, %s364
          %s366 = smul.u32 2, %s31
        $region44: #{tpu_custom_call.1} parent=39 // pred_fallthru
          _
        // Predicated region
        $region45: #{tpu_custom_call.1} parent=39 // pred_check
          %p367 = pneg %p85
        $region46: #{tpu_custom_call.1} parent=39 // pred_check_branch
          %369 = sbr.rel (%p367) target = $region48
        $region47: #{tpu_custom_call.1} parent=39 // pred_region
          %s370 = sand.u32 %s75, 1
          %s371 = scalar_lea.sflag [#allocation3], %s370
          %s372 = sand.u32 %s75, 1
          %s373 = smul.addr %s372, 8
          %s374 = scalar_lea.vmem [#allocation2], %s373
          %s375 = smul.u32 2, %s31
          %s377 = ssub.s32 128, 128
          %378 = vsyncadd %s371, %s377
          %s379 = smul.addr %s30, 2
          %s380 = sadd.s32 %s375, %s379
          %s381 = smul.addr %s380, 64
          %s382 = scalar_lea.hbm %s1, %s381
          %s384 = sshll.u32 %s374, 4
          %s385 = int_to_ptr.vmem [resolvable:$true] %s384
          %387 = dma.hbm_to_vmem [thread:$0]  %s382, 128, %s385, %s371
        $region48: #{tpu_custom_call.1} parent=39 // pred_fallthru
          _
        // Predicated region
        $region49: #{tpu_custom_call.1} parent=39 // pred_check
          %p388 = pneg %p113
        $region50: #{tpu_custom_call.1} parent=39 // pred_check_branch
          %390 = sbr.rel (%p388) target = $region52
        $region51: #{tpu_custom_call.1} parent=39 // pred_region
          %s391 = sand.u32 %s23, 1
          %s392 = scalar_lea.sflag [#allocation5], %s391
          %s393 = sand.u32 %s103, 1
          %s394 = smul.addr %s393, 8
          %s395 = scalar_lea.vmem [#allocation4], %s394
          %s396 = smul.u32 2, %s31
          %s398 = ssub.s32 128, 128
          %399 = vsyncadd %s392, %s398
          %s400 = smul.addr %s30, 2
          %s401 = sadd.s32 %s396, %s400
          %s402 = smul.addr %s401, 64
          %s403 = scalar_lea.hbm %s2, %s402
          %s405 = sshll.u32 %s395, 4
          %s406 = int_to_ptr.vmem [resolvable:$true] %s405
          %408 = dma.hbm_to_vmem [thread:$0]  %s403, 128, %s406, %s392
        $region52: #{tpu_custom_call.1} parent=39 // pred_fallthru
          _
        // Predicated region
        $region53: #{tpu_custom_call.1} parent=39 // pred_check
          %p409 = pneg %p141
        $region54: #{tpu_custom_call.1} parent=39 // pred_check_branch
          %411 = sbr.rel (%p409) target = $region56
        $region55: #{tpu_custom_call.1} parent=39 // pred_region
          %s412 = smul.u32 2, %s31
          %p413 = scmp.lt.s32.totalorder %s30, 1
          %s414 = scalar_select %p413, %s30, 1
          %p415 = scmp.lt.s32.totalorder %s412, 1
          %s416 = scalar_select %p415, %s412, 1
          %s417 = smul.addr %s414, 2
          %s418 = sadd.s32 %s416, %s417
          %s419 = smul.addr %s418, 4
          %s420 = scalar_lea.vmem %s3, %s419
          %s421 = smul.u32 2, %s31
        $region56: #{tpu_custom_call.1} parent=39 // pred_fallthru
          _
      $region40: #{tpu_custom_call.1} parent=5 // pred_fallthru
        _
      %p422 = scmp.le.s32.totalorder 1, %s23
      %p423 = scmp.lt.s32.totalorder %s23, 3
      %p424 = pnand %p422, %p423
      %p425 = pneg %p424
      // Predicated region
      $region57: #{tpu_custom_call.1} parent=5 // pred_check
        _
      $region58: #{tpu_custom_call.1} parent=5 // pred_check_branch
        %427 = sbr.rel (%p424) target = $region60
      $region59: #{tpu_custom_call.1} parent=5 // pred_region
        %s428 = ssub.s32 %s23, 1
        %s429 = sand.u32 %s78, 1
        %s430 = scalar_lea.sflag [#allocation3], %s429
        %s431 = sand.u32 %s78, 1
        %s432 = smul.addr %s431, 8
        %s433 = scalar_lea.vmem [#allocation2], %s432
        // Predicated region
        $region61: #{tpu_custom_call.1} parent=59 // pred_check
          %p434 = pneg %p91
        $region62: #{tpu_custom_call.1} parent=59 // pred_check_branch
          %436 = sbr.rel (%p434) target = $region64
        $region63: #{tpu_custom_call.1} parent=59 // pred_region
          %437 = dma.done %s430, 128
        $region64: #{tpu_custom_call.1} parent=59 // pred_fallthru
          _
        %s438 = sand.u32 %s28, 1
        %s439 = scalar_lea.sflag [#allocation5], %s438
        %s440 = sand.u32 %s106, 1
        %s441 = smul.addr %s440, 8
        %s442 = scalar_lea.vmem [#allocation4], %s441
        // Predicated region
        $region65: #{tpu_custom_call.1} parent=59 // pred_check
          %p443 = pneg %p119
        $region66: #{tpu_custom_call.1} parent=59 // pred_check_branch
          %445 = sbr.rel (%p443) target = $region68
        $region67: #{tpu_custom_call.1} parent=59 // pred_region
          %446 = dma.done %s439, 128
        $region68: #{tpu_custom_call.1} parent=59 // pred_fallthru
          _
        // Predicated region
        $region69: #{tpu_custom_call.1} parent=59 // pred_check
          %p447 = pneg %p168
        $region70: #{tpu_custom_call.1} parent=59 // pred_check_branch
          %449 = sbr.rel (%p447) target = $region72
        $region71: #{tpu_custom_call.1} parent=59 // pred_region
          %450 = dma.done [#allocation5], 64
        $region72: #{tpu_custom_call.1} parent=59 // pred_fallthru
          _
        // Predicated region
        $region73: #{tpu_custom_call.1} parent=59 // pred_check
          %p451 = pneg %p189
        $region74: #{tpu_custom_call.1} parent=59 // pred_check_branch
          %453 = sbr.rel (%p451) target = $region76
        $region75: #{tpu_custom_call.1} parent=59 // pred_region
          %454 = dma.done [#allocation8], 64
        $region76: #{tpu_custom_call.1} parent=59 // pred_fallthru
          _
        %s455 = smul.u32 2, %s33
        %p456 = scmp.lt.s32.totalorder %s32, 1
        %s457 = scalar_select %p456, %s32, 1
        %p458 = scmp.lt.s32.totalorder %s455, 1
        %s459 = scalar_select %p458, %s455, 1
        %s460 = smul.addr %s457, 2
        %s461 = sadd.s32 %s459, %s460
        %s462 = smul.addr %s461, 4
        %s463 = scalar_lea.vmem %s0, %s462
        %p464 = pneg %p63
        %p465 = pneg %p60
        %s466 = sand.u32 %s78, 1
        %s467 = scalar_lea.sflag [#allocation3], %s466
        %s468 = sand.u32 %s78, 1
        %s469 = smul.addr %s468, 8
        %s470 = scalar_lea.vmem [#allocation2], %s469
        %p471 = pneg %p91
        %p472 = pneg %p88
        %s473 = sand.u32 %s28, 1
        %s474 = scalar_lea.sflag [#allocation5], %s473
        %s475 = sand.u32 %s106, 1
        %s476 = smul.addr %s475, 8
        %s477 = scalar_lea.vmem [#allocation4], %s476
        %p478 = pneg %p119
        %p479 = pneg %p116
        %s480 = smul.u32 2, %s33
        %p481 = scmp.lt.s32.totalorder %s32, 1
        %s482 = scalar_select %p481, %s32, 1
        %p483 = scmp.lt.s32.totalorder %s480, 1
        %s484 = scalar_select %p483, %s480, 1
        %s485 = smul.addr %s482, 2
        %s486 = sadd.s32 %s484, %s485
        %s487 = smul.addr %s486, 4
        %s488 = scalar_lea.vmem %s3, %s487
        %p489 = pneg %p147
        %p490 = pneg %p144
        %p491 = pneg %p168
        %p492 = pneg %p165
        %p493 = pneg %p189
        %p494 = pneg %p186
        %p495 = pneg %p210
        %p496 = pneg %p207
        %p497 = pneg %p231
        %p498 = pneg %p228
        %p499 = pneg %p252
        %p500 = pneg %p249
        %p501 = pneg %p273
        %p502 = pneg %p270
        %p503 = pneg %p301
        %p504 = pneg %p298
        %s505 = smul.u32 2, %s33
        %p506 = scmp.lt.s32.totalorder %s32, 1
        %s507 = scalar_select %p506, %s32, 1
        %p508 = scmp.lt.s32.totalorder %s505, 1
        %s509 = scalar_select %p508, %s505, 1
        %s510 = smul.addr %s507, 2
        %s511 = sadd.s32 %s509, %s510
        %s512 = smul.addr %s511, 8
        %s513 = scalar_lea.vmem %s10, %s512
        %s514 = smul.u32 2, %s33
        %p515 = scmp.lt.s32.totalorder %s32, 1
        %s516 = scalar_select %p515, %s32, 1
        %p517 = scmp.lt.s32.totalorder %s514, 1
        %s518 = scalar_select %p517, %s514, 1
        %s519 = smul.addr %s516, 2
        %s520 = sadd.s32 %s518, %s519
        %s521 = smul.addr %s520, 4
        %s522 = scalar_lea.vmem %s0, %s521
        %s523 = smul.u32 2, %s33
        %s524 = smul.u32 2, %s33
        %s525 = smul.u32 2, %s33
        %s526 = smul.u32 2, %s33
        %p527 = scmp.lt.s32.totalorder %s32, 1
        %s528 = scalar_select %p527, %s32, 1
        %p529 = scmp.lt.s32.totalorder %s526, 1
        %s530 = scalar_select %p529, %s526, 1
        %s531 = smul.addr %s528, 2
        %s532 = sadd.s32 %s530, %s531
        %s533 = smul.addr %s532, 4
        %s534 = scalar_lea.vmem %s3, %s533
        %s535 = smul.u32 2, %s33
        %s536 = smul.u32 2, %s33
        %p537 = scmp.lt.s32.totalorder %s32, 1
        %s538 = scalar_select %p537, %s32, 1
        %p539 = scmp.lt.s32.totalorder %s536, 1
        %s540 = scalar_select %p539, %s536, 1
        %s541 = smul.addr %s538, 2
        %s542 = sadd.s32 %s540, %s541
        %s543 = smul.addr %s542, 8
        %s544 = scalar_lea.vmem %s10, %s543
        %s545 = smul.u32 2, %s33
        %v546 = vld [vmem:[#allocation6] sm:$0xf]
        %v547 = vld [vmem:[%s522] sm:$0xff]
        %v548 = vld [vmem:[#allocation7] sm:$0xf]
        %v549 = vld [vmem:[%s433] sm:$0xff]
        %v551 = vcombine.high %v549, %v549
        %vm552 = vcmask 31744
        %v554 = vsel %vm552, %v548, 0
        %vm556 = vcmask 1043456
        %v557 = vsel %vm556, %v549, 0
        %v559 = vsel %vm556, %v551, 0
        %561 = vmatprep.subr.mxu0 %v559
        %562 = vmatpush1.msra.mxu0 %v557
        %563 = vmatprep.subr.mxu0 0.0
        %564 = vmatpush1.msra.mxu0 0.0
        %565 = vmatprep.subr.mxu0 0.0
        %566 = vmatpush1.msra.mxu0 0.0
        %567 = vmatprep.subr.mxu0 0.0
        %568 = vmatpush1.msra.mxu0 0.0
        %569 = vmatprep.subr.mxu0 0.0
        %570 = vmatpush1.msra.mxu0 0.0
        %571 = vmatprep.subr.mxu0 0.0
        %572 = vmatpush1.msra.mxu0 0.0
        %573 = vmatprep.subr.mxu0 0.0
        %574 = vmatpush1.msra.mxu0 0.0
        %575 = vmatprep.subr.mxu0 0.0
        %576 = vmatpush1.msra.mxu0 0.0
        %577 = vmatprep.subr.mxu0 0.0
        %578 = vmatpush1.msra.mxu0 0.0
        %579 = vmatprep.subr.mxu0 0.0
        %580 = vmatpush1.msra.mxu0 0.0
        %581 = vmatprep.subr.mxu0 0.0
        %582 = vmatpush1.msra.mxu0 0.0
        %583 = vmatprep.subr.mxu0 0.0
        %584 = vmatpush1.msra.mxu0 0.0
        %585 = vmatprep.subr.mxu0 0.0
        %586 = vmatpush1.msra.mxu0 0.0
        %587 = vmatprep.subr.mxu0 0.0
        %588 = vmatpush1.msra.mxu0 0.0
        %589 = vmatprep.subr.mxu0 0.0
        %590 = vmatpush1.msra.mxu0 0.0
        %591 = vmatprep.subr.mxu0 0.0
        %592 = vmatpush1.msra.mxu0 0.0
        %593 = vmatprep.subr.mxu0 0.0
        %594 = vmatpush1.msra.mxu0 0.0
        %595 = vmatprep.subr.mxu0 0.0
        %596 = vmatpush1.msra.mxu0 0.0
        %597 = vmatprep.subr.mxu0 0.0
        %598 = vmatpush1.msra.mxu0 0.0
        %599 = vmatprep.subr.mxu0 0.0
        %600 = vmatpush1.msra.mxu0 0.0
        %601 = vmatprep.subr.mxu0 0.0
        %602 = vmatpush1.msra.mxu0 0.0
        %603 = vmatprep.subr.mxu0 0.0
        %604 = vmatpush1.msra.mxu0 0.0
        %605 = vmatprep.subr.mxu0 0.0
        %606 = vmatpush1.msra.mxu0 0.0
        %607 = vmatprep.subr.mxu0 0.0
        %608 = vmatpush1.msra.mxu0 0.0
        %609 = vmatprep.subr.mxu0 0.0
        %610 = vmatpush1.msra.mxu0 0.0
        %611 = vmatprep.subr.mxu0 0.0
        %612 = vmatpush1.msra.mxu0 0.0
        %613 = vmatprep.subr.mxu0 0.0
        %614 = vmatpush1.msra.mxu0 0.0
        %615 = vmatprep.subr.mxu0 0.0
        %616 = vmatpush1.msra.mxu0 0.0
        %617 = vmatprep.subr.mxu0 0.0
        %618 = vmatpush1.msra.mxu0 0.0
        %619 = vmatprep.subr.mxu0 0.0
        %620 = vmatpush1.msra.mxu0 0.0
        %621 = vmatprep.subr.mxu0 0.0
        %622 = vmatpush1.msra.mxu0 0.0
        %623 = vmatprep.subr.mxu0 0.0
        %624 = vmatpush1.msra.mxu0 0.0
        %625 = vmatprep.mubr.f32.mxu0 0.0
        %626 = vmatmul.mubr.f32.gmra.mrb[0].mxu0 %v554
        %v627 = vpop.f32.mrb[0].mxu0
        %v628 = vadd.f32 0.0, %v627
        %v629 = vpop.f32.mrb[0].mxu0
        %v630 = vadd.f32 0.0, %v629
        %631 = vdwg.mxu0
        %v633 = vcombine.high %v547, %v547
        %v635 = vsel %vm552, %v546, 0
        %v637 = vsel %vm556, %v547, 0
        %v639 = vsel %vm556, %v633, 0
        %641 = vmatprep.subr.mxu0 %v639
        %642 = vmatpush1.msra.mxu0 %v637
        %643 = vmatprep.subr.mxu0 0.0
        %644 = vmatpush1.msra.mxu0 0.0
        %645 = vmatprep.subr.mxu0 0.0
        %646 = vmatpush1.msra.mxu0 0.0
        %647 = vmatprep.subr.mxu0 0.0
        %648 = vmatpush1.msra.mxu0 0.0
        %649 = vmatprep.subr.mxu0 0.0
        %650 = vmatpush1.msra.mxu0 0.0
        %651 = vmatprep.subr.mxu0 0.0
        %652 = vmatpush1.msra.mxu0 0.0
        %653 = vmatprep.subr.mxu0 0.0
        %654 = vmatpush1.msra.mxu0 0.0
        %655 = vmatprep.subr.mxu0 0.0
        %656 = vmatpush1.msra.mxu0 0.0
        %657 = vmatprep.subr.mxu0 0.0
        %658 = vmatpush1.msra.mxu0 0.0
        %659 = vmatprep.subr.mxu0 0.0
        %660 = vmatpush1.msra.mxu0 0.0
        %661 = vmatprep.subr.mxu0 0.0
        %662 = vmatpush1.msra.mxu0 0.0
        %663 = vmatprep.subr.mxu0 0.0
        %664 = vmatpush1.msra.mxu0 0.0
        %665 = vmatprep.subr.mxu0 0.0
        %666 = vmatpush1.msra.mxu0 0.0
        %667 = vmatprep.subr.mxu0 0.0
        %668 = vmatpush1.msra.mxu0 0.0
        %669 = vmatprep.subr.mxu0 0.0
        %670 = vmatpush1.msra.mxu0 0.0
        %671 = vmatprep.subr.mxu0 0.0
        %672 = vmatpush1.msra.mxu0 0.0
        %673 = vmatprep.subr.mxu0 0.0
        %674 = vmatpush1.msra.mxu0 0.0
        %675 = vmatprep.subr.mxu0 0.0
        %676 = vmatpush1.msra.mxu0 0.0
        %677 = vmatprep.subr.mxu0 0.0
        %678 = vmatpush1.msra.mxu0 0.0
        %679 = vmatprep.subr.mxu0 0.0
        %680 = vmatpush1.msra.mxu0 0.0
        %681 = vmatprep.subr.mxu0 0.0
        %682 = vmatpush1.msra.mxu0 0.0
        %683 = vmatprep.subr.mxu0 0.0
        %684 = vmatpush1.msra.mxu0 0.0
        %685 = vmatprep.subr.mxu0 0.0
        %686 = vmatpush1.msra.mxu0 0.0
        %687 = vmatprep.subr.mxu0 0.0
        %688 = vmatpush1.msra.mxu0 0.0
        %689 = vmatprep.subr.mxu0 0.0
        %690 = vmatpush1.msra.mxu0 0.0
        %691 = vmatprep.subr.mxu0 0.0
        %692 = vmatpush1.msra.mxu0 0.0
        %693 = vmatprep.subr.mxu0 0.0
        %694 = vmatpush1.msra.mxu0 0.0
        %695 = vmatprep.subr.mxu0 0.0
        %696 = vmatpush1.msra.mxu0 0.0
        %697 = vmatprep.subr.mxu0 0.0
        %698 = vmatpush1.msra.mxu0 0.0
        %699 = vmatprep.subr.mxu0 0.0
        %700 = vmatpush1.msra.mxu0 0.0
        %701 = vmatprep.subr.mxu0 0.0
        %702 = vmatpush1.msra.mxu0 0.0
        %703 = vmatprep.subr.mxu0 0.0
        %704 = vmatpush1.msra.mxu0 0.0
        %705 = vmatprep.mubr.f32.mxu0 0.0
        %706 = vmatmul.mubr.f32.gmra.mrb[0].mxu0 %v635
        %v707 = vpop.f32.mrb[0].mxu0
        %v708 = vadd.f32 %v628, %v707
        %v709 = vpop.f32.mrb[0].mxu0
        %v710 = vadd.f32 %v630, %v709
        %711 = vdwg.mxu0
        %v712 = vld [vmem:[%s6] sm:$0xf]
        %v713 = vld [vmem:[%s442] sm:$0xff]
        %v715 = vcombine.high %v713, %v713
        %v717 = vsel %vm552, %v712, 0
        %v719 = vsel %vm556, %v713, 0
        %v721 = vsel %vm556, %v715, 0
        %723 = vmatprep.subr.mxu0 %v721
        %724 = vmatpush1.msra.mxu0 %v719
        %725 = vmatprep.subr.mxu0 0.0
        %726 = vmatpush1.msra.mxu0 0.0
        %727 = vmatprep.subr.mxu0 0.0
        %728 = vmatpush1.msra.mxu0 0.0
        %729 = vmatprep.subr.mxu0 0.0
        %730 = vmatpush1.msra.mxu0 0.0
        %731 = vmatprep.subr.mxu0 0.0
        %732 = vmatpush1.msra.mxu0 0.0
        %733 = vmatprep.subr.mxu0 0.0
        %734 = vmatpush1.msra.mxu0 0.0
        %735 = vmatprep.subr.mxu0 0.0
        %736 = vmatpush1.msra.mxu0 0.0
        %737 = vmatprep.subr.mxu0 0.0
        %738 = vmatpush1.msra.mxu0 0.0
        %739 = vmatprep.subr.mxu0 0.0
        %740 = vmatpush1.msra.mxu0 0.0
        %741 = vmatprep.subr.mxu0 0.0
        %742 = vmatpush1.msra.mxu0 0.0
        %743 = vmatprep.subr.mxu0 0.0
        %744 = vmatpush1.msra.mxu0 0.0
        %745 = vmatprep.subr.mxu0 0.0
        %746 = vmatpush1.msra.mxu0 0.0
        %747 = vmatprep.subr.mxu0 0.0
        %748 = vmatpush1.msra.mxu0 0.0
        %749 = vmatprep.subr.mxu0 0.0
        %750 = vmatpush1.msra.mxu0 0.0
        %751 = vmatprep.subr.mxu0 0.0
        %752 = vmatpush1.msra.mxu0 0.0
        %753 = vmatprep.subr.mxu0 0.0
        %754 = vmatpush1.msra.mxu0 0.0
        %755 = vmatprep.subr.mxu0 0.0
        %756 = vmatpush1.msra.mxu0 0.0
        %757 = vmatprep.subr.mxu0 0.0
        %758 = vmatpush1.msra.mxu0 0.0
        %759 = vmatprep.subr.mxu0 0.0
        %760 = vmatpush1.msra.mxu0 0.0
        %761 = vmatprep.subr.mxu0 0.0
        %762 = vmatpush1.msra.mxu0 0.0
        %763 = vmatprep.subr.mxu0 0.0
        %764 = vmatpush1.msra.mxu0 0.0
        %765 = vmatprep.subr.mxu0 0.0
        %766 = vmatpush1.msra.mxu0 0.0
        %767 = vmatprep.subr.mxu0 0.0
        %768 = vmatpush1.msra.mxu0 0.0
        %769 = vmatprep.subr.mxu0 0.0
        %770 = vmatpush1.msra.mxu0 0.0
        %771 = vmatprep.subr.mxu0 0.0
        %772 = vmatpush1.msra.mxu0 0.0
        %773 = vmatprep.subr.mxu0 0.0
        %774 = vmatpush1.msra.mxu0 0.0
        %775 = vmatprep.subr.mxu0 0.0
        %776 = vmatpush1.msra.mxu0 0.0
        %777 = vmatprep.subr.mxu0 0.0
        %778 = vmatpush1.msra.mxu0 0.0
        %779 = vmatprep.subr.mxu0 0.0
        %780 = vmatpush1.msra.mxu0 0.0
        %781 = vmatprep.subr.mxu0 0.0
        %782 = vmatpush1.msra.mxu0 0.0
        %783 = vmatprep.subr.mxu0 0.0
        %784 = vmatpush1.msra.mxu0 0.0
        %785 = vmatprep.subr.mxu0 0.0
        %786 = vmatpush1.msra.mxu0 0.0
        %787 = vmatprep.mubr.f32.mxu0 0.0
        %788 = vmatmul.mubr.f32.gmra.mrb[0].mxu0 %v717
        %v789 = vpop.f32.mrb[0].mxu0
        %v790 = vadd.f32 0.0, %v789
        %v791 = vpop.f32.mrb[0].mxu0
        %v792 = vadd.f32 0.0, %v791
        %793 = vdwg.mxu0
        %v794 = vadd.f32 %v708, %v790
        %v795 = vadd.f32 %v710, %v792
        %v796 = vld [vmem:[%s7] sm:$0xf]
        %v797 = vld [vmem:[%s534] sm:$0xff]
        %v799 = vcombine.high %v797, %v797
        %v801 = vsel %vm552, %v796, 0
        %v803 = vsel %vm556, %v797, 0
        %v805 = vsel %vm556, %v799, 0
        %807 = vmatprep.subr.mxu0 %v805
        %808 = vmatpush1.msra.mxu0 %v803
        %809 = vmatprep.subr.mxu0 0.0
        %810 = vmatpush1.msra.mxu0 0.0
        %811 = vmatprep.subr.mxu0 0.0
        %812 = vmatpush1.msra.mxu0 0.0
        %813 = vmatprep.subr.mxu0 0.0
        %814 = vmatpush1.msra.mxu0 0.0
        %815 = vmatprep.subr.mxu0 0.0
        %816 = vmatpush1.msra.mxu0 0.0
        %817 = vmatprep.subr.mxu0 0.0
        %818 = vmatpush1.msra.mxu0 0.0
        %819 = vmatprep.subr.mxu0 0.0
        %820 = vmatpush1.msra.mxu0 0.0
        %821 = vmatprep.subr.mxu0 0.0
        %822 = vmatpush1.msra.mxu0 0.0
        %823 = vmatprep.subr.mxu0 0.0
        %824 = vmatpush1.msra.mxu0 0.0
        %825 = vmatprep.subr.mxu0 0.0
        %826 = vmatpush1.msra.mxu0 0.0
        %827 = vmatprep.subr.mxu0 0.0
        %828 = vmatpush1.msra.mxu0 0.0
        %829 = vmatprep.subr.mxu0 0.0
        %830 = vmatpush1.msra.mxu0 0.0
        %831 = vmatprep.subr.mxu0 0.0
        %832 = vmatpush1.msra.mxu0 0.0
        %833 = vmatprep.subr.mxu0 0.0
        %834 = vmatpush1.msra.mxu0 0.0
        %835 = vmatprep.subr.mxu0 0.0
        %836 = vmatpush1.msra.mxu0 0.0
        %837 = vmatprep.subr.mxu0 0.0
        %838 = vmatpush1.msra.mxu0 0.0
        %839 = vmatprep.subr.mxu0 0.0
        %840 = vmatpush1.msra.mxu0 0.0
        %841 = vmatprep.subr.mxu0 0.0
        %842 = vmatpush1.msra.mxu0 0.0
        %843 = vmatprep.subr.mxu0 0.0
        %844 = vmatpush1.msra.mxu0 0.0
        %845 = vmatprep.subr.mxu0 0.0
        %846 = vmatpush1.msra.mxu0 0.0
        %847 = vmatprep.subr.mxu0 0.0
        %848 = vmatpush1.msra.mxu0 0.0
        %849 = vmatprep.subr.mxu0 0.0
        %850 = vmatpush1.msra.mxu0 0.0
        %851 = vmatprep.subr.mxu0 0.0
        %852 = vmatpush1.msra.mxu0 0.0
        %853 = vmatprep.subr.mxu0 0.0
        %854 = vmatpush1.msra.mxu0 0.0
        %855 = vmatprep.subr.mxu0 0.0
        %856 = vmatpush1.msra.mxu0 0.0
        %857 = vmatprep.subr.mxu0 0.0
        %858 = vmatpush1.msra.mxu0 0.0
        %859 = vmatprep.subr.mxu0 0.0
        %860 = vmatpush1.msra.mxu0 0.0
        %861 = vmatprep.subr.mxu0 0.0
        %862 = vmatpush1.msra.mxu0 0.0
        %863 = vmatprep.subr.mxu0 0.0
        %864 = vmatpush1.msra.mxu0 0.0
        %865 = vmatprep.subr.mxu0 0.0
        %866 = vmatpush1.msra.mxu0 0.0
        %867 = vmatprep.subr.mxu0 0.0
        %868 = vmatpush1.msra.mxu0 0.0
        %869 = vmatprep.subr.mxu0 0.0
        %870 = vmatpush1.msra.mxu0 0.0
        %871 = vmatprep.mubr.f32.mxu0 0.0
        %872 = vmatmul.mubr.f32.gmra.mrb[0].mxu0 %v801
        %v873 = vpop.f32.mrb[0].mxu0
        %v874 = vadd.f32 0.0, %v873
        %v875 = vpop.f32.mrb[0].mxu0
        %v876 = vadd.f32 0.0, %v875
        %877 = vdwg.mxu0
        %v878 = vadd.f32 %v794, %v874
        %v879 = vadd.f32 %v795, %v876
        %v880 = vmax.f32 %v878, 0.0
        %v881 = vmax.f32 %v879, 0.0
        %v882 = vld [vmem:[%s8] sm:$0x1f]
        %v883 = vld [vmem:[%s9] sm:$0x1f]
        %885 = vset.pattern.permute.xlu0 0
        %886 = vperm.xlu0 %885, %v883
        %v887 = vpop.permute.xlu0 %886
        %v890 = vsel %vm552, %v882, 0
        %v893 = vsel %vm556, %v880, 0
        %v896 = vsel %vm556, %v881, 0
        %898 = vmatprep.subr.mxu0 %v896
        %899 = vmatpush1.msra.mxu0 %v893
        %900 = vmatprep.subr.mxu0 0.0
        %901 = vmatpush1.msra.mxu0 0.0
        %902 = vmatprep.subr.mxu0 0.0
        %903 = vmatpush1.msra.mxu0 0.0
        %904 = vmatprep.subr.mxu0 0.0
        %905 = vmatpush1.msra.mxu0 0.0
        %906 = vmatprep.subr.mxu0 0.0
        %907 = vmatpush1.msra.mxu0 0.0
        %908 = vmatprep.subr.mxu0 0.0
        %909 = vmatpush1.msra.mxu0 0.0
        %910 = vmatprep.subr.mxu0 0.0
        %911 = vmatpush1.msra.mxu0 0.0
        %912 = vmatprep.subr.mxu0 0.0
        %913 = vmatpush1.msra.mxu0 0.0
        %914 = vmatprep.subr.mxu0 0.0
        %915 = vmatpush1.msra.mxu0 0.0
        %916 = vmatprep.subr.mxu0 0.0
        %917 = vmatpush1.msra.mxu0 0.0
        %918 = vmatprep.subr.mxu0 0.0
        %919 = vmatpush1.msra.mxu0 0.0
        %920 = vmatprep.subr.mxu0 0.0
        %921 = vmatpush1.msra.mxu0 0.0
        %922 = vmatprep.subr.mxu0 0.0
        %923 = vmatpush1.msra.mxu0 0.0
        %924 = vmatprep.subr.mxu0 0.0
        %925 = vmatpush1.msra.mxu0 0.0
        %926 = vmatprep.subr.mxu0 0.0
        %927 = vmatpush1.msra.mxu0 0.0
        %928 = vmatprep.subr.mxu0 0.0
        %929 = vmatpush1.msra.mxu0 0.0
        %930 = vmatprep.subr.mxu0 0.0
        %931 = vmatpush1.msra.mxu0 0.0
        %932 = vmatprep.subr.mxu0 0.0
        %933 = vmatpush1.msra.mxu0 0.0
        %934 = vmatprep.subr.mxu0 0.0
        %935 = vmatpush1.msra.mxu0 0.0
        %936 = vmatprep.subr.mxu0 0.0
        %937 = vmatpush1.msra.mxu0 0.0
        %938 = vmatprep.subr.mxu0 0.0
        %939 = vmatpush1.msra.mxu0 0.0
        %940 = vmatprep.subr.mxu0 0.0
        %941 = vmatpush1.msra.mxu0 0.0
        %942 = vmatprep.subr.mxu0 0.0
        %943 = vmatpush1.msra.mxu0 0.0
        %944 = vmatprep.subr.mxu0 0.0
        %945 = vmatpush1.msra.mxu0 0.0
        %946 = vmatprep.subr.mxu0 0.0
        %947 = vmatpush1.msra.mxu0 0.0
        %948 = vmatprep.subr.mxu0 0.0
        %949 = vmatpush1.msra.mxu0 0.0
        %950 = vmatprep.subr.mxu0 0.0
        %951 = vmatpush1.msra.mxu0 0.0
        %952 = vmatprep.subr.mxu0 0.0
        %953 = vmatpush1.msra.mxu0 0.0
        %954 = vmatprep.subr.mxu0 0.0
        %955 = vmatpush1.msra.mxu0 0.0
        %956 = vmatprep.subr.mxu0 0.0
        %957 = vmatpush1.msra.mxu0 0.0
        %958 = vmatprep.subr.mxu0 0.0
        %959 = vmatpush1.msra.mxu0 0.0
        %960 = vmatprep.subr.mxu0 0.0
        %961 = vmatpush1.msra.mxu0 0.0
        %962 = vmatprep.mubr.f32.mxu0 0.0
        %963 = vmatmul.mubr.f32.gmra.mrb[0].mxu0 %v890
        %v964 = vpop.f32.mrb[0].mxu0
        %v965 = vadd.f32 %v887, %v964
        %v966 = vpop.f32.mrb[0].mxu0
        %v967 = vadd.f32 %v887, %v966
        %968 = vdwg.mxu0
        %969 = vst [vmem:[%s544] sm:$0x1f] %v965
        %970 = vst [vmem:[%s544 + $0x8] sm:$0x1f] %v967
        %s971 = smul.u32 2, %s33
        %p972 = scmp.lt.s32.totalorder %s32, 1
        %s973 = scalar_select %p972, %s32, 1
        %p974 = scmp.lt.s32.totalorder %s971, 1
        %s975 = scalar_select %p974, %s971, 1
        %s976 = smul.addr %s973, 2
        %s977 = sadd.s32 %s975, %s976
        %s978 = smul.addr %s977, 8
        %s979 = scalar_lea.vmem %s10, %s978
        // Predicated region
        $region77: #{tpu_custom_call.1} parent=59 // pred_check
          %p980 = pneg %p298
        $region78: #{tpu_custom_call.1} parent=59 // pred_check_branch
          %982 = sbr.rel (%p980) target = $region80
        $region79: #{tpu_custom_call.1} parent=59 // pred_region
          %s983 = smul.u32 2, %s33
        $region80: #{tpu_custom_call.1} parent=59 // pred_fallthru
          _
      $region60: #{tpu_custom_call.1} parent=5 // pred_fallthru
        _
      %p984 = scmp.le.s32.totalorder 2, %s23
      // Predicated region
      $region81: #{tpu_custom_call.1} parent=5 // pred_check
        %p985 = pneg %p984
      $region82: #{tpu_custom_call.1} parent=5 // pred_check_branch
        %987 = sbr.rel (%p985) target = $region84
      $region83: #{tpu_custom_call.1} parent=5 // pred_region
        %s988 = ssub.s32 %s23, 2
        // Predicated region
        $region85: #{tpu_custom_call.1} parent=83 // pred_check
          %p989 = pneg %p304
        $region86: #{tpu_custom_call.1} parent=83 // pred_check_branch
          %991 = sbr.rel (%p989) target = $region88
        $region87: #{tpu_custom_call.1} parent=83 // pred_region
          %s992 = smul.u32 2, %s35
          %p993 = scmp.lt.s32.totalorder %s34, 1
          %s994 = scalar_select %p993, %s34, 1
          %p995 = scmp.lt.s32.totalorder %s992, 1
          %s996 = scalar_select %p995, %s992, 1
          %s997 = smul.addr %s994, 2
          %s998 = sadd.s32 %s996, %s997
          %s999 = smul.addr %s998, 8
          %s1000 = scalar_lea.vmem %s10, %s999
        $region88: #{tpu_custom_call.1} parent=83 // pred_fallthru
          _
      $region84: #{tpu_custom_call.1} parent=5 // pred_fallthru
        _
    $region6: #{tpu_custom_call.1} parent=1 // loop_footer
      %s27 = sadd.s32 1, %s23
    $region7: #{tpu_custom_call.1} parent=1 // loop_footer_branch
      %22 = sbr.rel target = $region3
    $region8: #{tpu_custom_call.1} parent=1 // loop_exit
      _
    %1001 = vsyncpa [#allocation3], 1
    %s1002 = scalar_lea.sflag [#allocation3], 1
    %1003 = vsyncpa %s1002, 1
    %1004 = vsyncpa [#allocation5], 1
    %s1005 = scalar_lea.sflag [#allocation5], 1
    %1006 = vsyncpa %s1005, 1
    %1007 = vsyncpa [#allocation8], 1

</llo_original>
